<compile_context>
chip_gen: v5e
topology: v5e:2x2
jax: 0.10.0
libtpu: 0.0.40
codegen_flags: <defaults>
</compile_context>

<pallas_src>
import functools

import jax
import jax.numpy as jnp
from jax.experimental import pallas as pl
from jax.experimental.pallas import tpu as pltpu


def _round_up(x: int, m: int) -> int:
    return (x + m - 1) // m * m


def _bow_kernel(ids_ref, tbl_ref, b_ref, out_ref, *, reduce_mode, pad_idx):
    # ids_ref: (block_b, T)  int32  token ids for block_b batch rows
    # tbl_ref: (V, E)        bf16   fused table = embed_weight @ W^T
    # b_ref:   (1, E)        f32    Linear bias
    # out_ref: (block_b, E)  f32    reduced output (lane-dense)
    block_b, seq_len = ids_ref.shape
    vocab, e_dim = tbl_ref.shape
    n_rows = block_b * seq_len

    ids = ids_ref[...]                                            # (block_b, T)

    # Fused Embedding + Linear gather on the MXU:
    #   relu(emb[id] @ W^T + b) == relu((emb @ W^T)[id] + b)
    # One-hot is built directly in bf16 (no f32 intermediate / extra cast).
    vocab_iota = jax.lax.broadcasted_iota(jnp.int32, (block_b, seq_len, vocab), 2)
    one_hot = (ids[:, :, None] == vocab_iota).astype(tbl_ref.dtype)
    x = jnp.dot(one_hot.reshape(n_rows, vocab), tbl_ref[...],
                preferred_element_type=jnp.float32)               # (n_rows, E) f32

    # Bias + ReLU in f32 (v5e has no bf16 VPU path; keep elementwise f32).
    h = jnp.maximum(x + b_ref[...], 0.0)                          # (n_rows, E) f32
    # TODO(synk): nn.Dropout with p=0.0 (module default) is an identity; p>0 in
    # training mode is not implemented here.

    # Pad mask derived in-kernel from the ids.
    maskf = (ids != pad_idx).astype(jnp.float32)                  # (block_b, T)
    h3 = h.reshape(block_b, seq_len, e_dim) * maskf[:, :, None]   # zero pad rows

    if reduce_mode == "max":
        # ReLU output >= 0, so zeroed pad rows never exceed the max — identical
        # to the PyTorch module (which also maxes over the zeroed positions).
        red = jnp.max(h3, axis=1)
    elif reduce_mode == "mean":
        # Denominator clamped to 1 for all-pad rows (raw PyTorch would divide
        # by zero); exact divide for tight numerical match.
        length = jnp.maximum(jnp.sum(maskf, axis=1, keepdims=True), 1.0)
        red = jnp.sum(h3, axis=1) / length
    else:  # "sum"
        red = jnp.sum(h3, axis=1)
    out_ref[...] = red                                            # (block_b, E)


def bow_encoder_forward(encoder_input, embed_weight, lin_weight, lin_bias,
                        pad_idx=0, reduce="max", block_b=None,
                        compute_dtype=jnp.bfloat16):
    """Forward pass of BOW_Encoder.

    encoder_input: (B, T) integer token ids
    embed_weight:  (V, E) f32 embedding table
    lin_weight:    (E, E) f32 torch-style Linear weight (out, in)
    lin_bias:      (E,)   f32
    Returns (out (B, 1, E) f32, pad_mask (B, T) bool)  ==  (x.unsqueeze(1), ~mask).
    """
    assert reduce in ("sum", "mean", "max")
    B, T = encoder_input.shape
    V, E = embed_weight.shape

    # Generation-aware VMEM ceiling: ~80% of physical VMEM per core
    # (~51 MiB on v7x, ~102 MiB on v5e/v6e).  Conservative fallback = v7x.
    try:
        vmem_cap = int(pltpu.get_tpu_info().vmem_capacity_bytes)
    except Exception:
        vmem_cap = 64 * 1024 * 1024
    vmem_limit = int(0.8 * vmem_cap)

    # ---- batch-tile selection -------------------------------------------
    tbl_bytes = V * E * 2 + E * 4            # resident fused table (bf16) + bias

    def step_bytes(bb):
        n_rows = bb * T
        return (n_rows * V * 2               # bf16 one-hot intermediate
                + 2 * n_rows * E * 4         # f32 activations (x, h)
                + 2 * (n_rows * 4 + bb * E * 4))   # double-buffered ids + out

    if block_b is None:
        bb = _round_up(max(1, 2048 // max(T, 1)), 8)   # ~2048 MXU rows per step
        if B > 8:
            # Keep >= 2 grid steps so the "parallel" batch axis can shard
            # across v7x's two TensorCores (free on v5e/v6e).
            bb = min(bb, _round_up(pl.cdiv(B, 2), 8))
        while bb > 8 and tbl_bytes + step_bytes(bb) > vmem_limit // 2:
            bb -= 8
        block_b = bb
    block_b = min(_round_up(block_b, 8), _round_up(B, 8))
    Bp = _round_up(B, block_b)
    grid = (Bp // block_b,)

    # Pad the batch with pad tokens so it divides evenly; extra rows are dropped.
    ids = encoder_input.astype(jnp.int32)
    if Bp != B:
        ids = jnp.pad(ids, ((0, Bp - B), (0, 0)), constant_values=pad_idx)

    # Algebraic fusion of Embedding and Linear weight, in f32, cast once to bf16.
    emb_proj = jnp.dot(embed_weight.astype(jnp.float32),
                       lin_weight.astype(jnp.float32).T)          # (V, E) f32
    tbl = emb_proj.astype(compute_dtype)                          # (V, E) bf16
    bias2 = lin_bias.reshape(1, E).astype(jnp.float32)

    kernel = functools.partial(_bow_kernel, reduce_mode=reduce, pad_idx=pad_idx)

    def run(single_buffer_weights):
        const_kw = ({"pipeline_mode": pl.Buffered(1)}
                    if single_buffer_weights else {})
        in_specs = [
            pl.BlockSpec((block_b, T), lambda b: (b, 0)),             # token ids
            pl.BlockSpec((V, E), lambda b: (0, 0), **const_kw),       # fused table
            pl.BlockSpec((1, E), lambda b: (0, 0), **const_kw),       # bias
        ]
        out = pl.pallas_call(
            kernel,
            out_shape=jax.ShapeDtypeStruct((Bp, E), jnp.float32),
            grid_spec=pltpu.PrefetchScalarGridSpec(
                num_scalar_prefetch=0,
                grid=grid,
                in_specs=in_specs,
                out_specs=pl.BlockSpec((block_b, E), lambda b: (b, 0)),
            ),
            compiler_params=pltpu.CompilerParams(
                dimension_semantics=("parallel",),
                vmem_limit_bytes=vmem_limit,
            ),
        )(ids, tbl, bias2)
        return jax.block_until_ready(out)

    try:
        out = run(True)
    except Exception:
        # Fallback for jax builds that reject pipeline_mode=pl.Buffered(1) on a
        # top-level pallas_call BlockSpec (correctness identical, only the
        # constant inputs get double-buffered).
        out = run(False)

    out = out[:B]
    pad_mask = encoder_input == pad_idx               # == ~mask of the module
    return out[:, None, :], pad_mask


def _reference(encoder_input, embed_weight, lin_weight, lin_bias, pad_idx=0,
               reduce="max", compute_dtype=jnp.bfloat16):
    # Pure-JAX reference mirroring the kernel's numerics: fused table emb @ W^T
    # computed in f32, quantized once to bf16; everything downstream in f32.
    proj = jnp.dot(embed_weight.astype(jnp.float32),
                   lin_weight.astype(jnp.float32).T)
    proj = proj.astype(compute_dtype).astype(jnp.float32)
    x = jnp.take(proj, encoder_input, axis=0) + lin_bias
    x = jnp.maximum(x, 0.0)
    mask = encoder_input != pad_idx
    x = x * mask[..., None].astype(x.dtype)
    if reduce == "mean":
        x = x.sum(axis=1) / jnp.maximum(mask.sum(axis=1, keepdims=True), 1)
    elif reduce == "max":
        x = x.max(axis=1)
    else:
        x = x.sum(axis=1)
    return x[:, None, :], jnp.logical_not(mask)


if __name__ == "__main__":
    B, T, V, E = 16, 8, 128, 128
    pad_idx = 0

    key = jax.random.PRNGKey(0)
    k_tok, k_emb, k_w, k_b = jax.random.split(key, 4)

    # Deterministic parameter init (shapes / init from the module's __init__).
    embed_weight = jax.random.normal(k_emb, (V, E), jnp.float32) * (E ** -0.5)
    embed_weight = embed_weight.at[pad_idx].set(0.0)            # padding_idx row = 0
    bound = 1.0 / (E ** 0.5)
    lin_weight = jax.random.uniform(k_w, (E, E), jnp.float32, -bound, bound)  # (out, in)
    lin_bias = jax.random.uniform(k_b, (E,), jnp.float32, -bound, bound)

    # Deterministic inputs: token ids with padding at some tails.
    encoder_input = jax.random.randint(k_tok, (B, T), 1, V, dtype=jnp.int32)
    encoder_input = encoder_input.at[0, T - 2:].set(pad_idx)
    encoder_input = encoder_input.at[1, T - 3:].set(pad_idx)
    encoder_input = encoder_input.at[5, T - 5:].set(pad_idx)

    for reduce_mode in ("max", "sum", "mean"):
        out, pad_mask = bow_encoder_forward(
            encoder_input, embed_weight, lin_weight, lin_bias,
            pad_idx=pad_idx, reduce=reduce_mode)   # heuristic -> block_b=8, grid=(2,)
        out = jax.block_until_ready(out)
        pad_mask = jax.block_until_ready(pad_mask)

        ref_out, ref_mask = _reference(
            encoder_input, embed_weight, lin_weight, lin_bias,
            pad_idx=pad_idx, reduce=reduce_mode)
        assert out.shape == (B, 1, E) and pad_mask.shape == (B, T)
        assert jnp.allclose(out, ref_out, atol=1e-4, rtol=1e-4), reduce_mode
        assert bool(jnp.all(pad_mask == ref_mask)), reduce_mode

    print("KERNEL_OK")
</pallas_src>

<mosaic_0001>
module attributes {stable_mosaic.version = 11 : i64} {
  func.func @_bow_kernel(%arg0: i32, %arg1: memref<8x8xi32, #tpu.memory_space<vmem>>, %arg2: memref<128x128xbf16, #tpu.memory_space<vmem>>, %arg3: memref<1x128xf32, #tpu.memory_space<vmem>>, %arg4: memref<8x128xf32, #tpu.memory_space<vmem>>) attributes {dimension_semantics = [#tpu.dimension_semantics<parallel>], iteration_bounds = array<i64: 2>, scalar_prefetch = 0 : i64, scratch_operands = 0 : i64, tpu.core_type = #tpu.core_type<tc>, window_params = [{transform_indices = @transform_0, window_bounds = array<i64: 8, 8>}, {pipeline_mode = #tpu.pipeline_mode<synchronous>, transform_indices = @transform_1, window_bounds = array<i64: 128, 128>}, {pipeline_mode = #tpu.pipeline_mode<synchronous>, transform_indices = @transform_2, window_bounds = array<i64: 1, 128>}, {transform_indices = @transform_3, window_bounds = array<i64: 8, 128>}]} {
    %c0 = arith.constant 0 : index
    %c0_0 = arith.constant 0 : index
    %0 = vector.load %arg1[%c0, %c0_0] : memref<8x8xi32, #tpu.memory_space<vmem>>, vector<8x8xi32>
    %1 = tpu.iota {dimensions = array<i32: 2>} : vector<8x8x128xi32>
    %2 = vector.shape_cast %0 : vector<8x8xi32> to vector<8x8x1xi32>
    %3 = vector.broadcast %2 : vector<8x8x1xi32> to vector<8x8x128xi32>
    %4 = arith.cmpi eq, %3, %1 : vector<8x8x128xi32>
    %5 = arith.extui %4 : vector<8x8x128xi1> to vector<8x8x128xi32>
    %6 = arith.sitofp %5 : vector<8x8x128xi32> to vector<8x8x128xf32>
    %7 = arith.truncf %6 : vector<8x8x128xf32> to vector<8x8x128xbf16>
    %8 = vector.shape_cast %7 : vector<8x8x128xbf16> to vector<64x128xbf16>
    %c0_1 = arith.constant 0 : index
    %c0_2 = arith.constant 0 : index
    %9 = vector.load %arg2[%c0_1, %c0_2] : memref<128x128xbf16, #tpu.memory_space<vmem>>, vector<128x128xbf16>
    %cst = arith.constant dense<0.000000e+00> : vector<64x128xf32>
    %10 = tpu.matmul %8, %9, %cst {dimension_numbers = #tpu.dot_dimension_numbers<[1], [0], [0], [1], [0, 0, 1, 1], [], []>} : vector<64x128xbf16>, vector<128x128xbf16>, vector<64x128xf32> -> vector<64x128xf32>
    %c0_3 = arith.constant 0 : index
    %c0_4 = arith.constant 0 : index
    %11 = vector.load %arg3[%c0_3, %c0_4] : memref<1x128xf32, #tpu.memory_space<vmem>>, vector<1x128xf32>
    %12 = vector.broadcast %11 : vector<1x128xf32> to vector<64x128xf32>
    %13 = arith.addf %10, %12 : vector<64x128xf32>
    %cst_5 = arith.constant 0.000000e+00 : f32
    %14 = vector.broadcast %cst_5 : f32 to vector<64x128xf32>
    %15 = arith.maximumf %13, %14 : vector<64x128xf32>
    %c0_i32 = arith.constant 0 : i32
    %16 = vector.broadcast %c0_i32 : i32 to vector<8x8xi32>
    %17 = arith.cmpi ne, %0, %16 : vector<8x8xi32>
    %18 = arith.extui %17 : vector<8x8xi1> to vector<8x8xi32>
    %19 = arith.sitofp %18 : vector<8x8xi32> to vector<8x8xf32>
    %20 = vector.shape_cast %15 : vector<64x128xf32> to vector<8x8x128xf32>
    %21 = vector.shape_cast %19 : vector<8x8xf32> to vector<8x8x1xf32>
    %22 = vector.broadcast %21 : vector<8x8x1xf32> to vector<8x8x128xf32>
    %23 = arith.mulf %20, %22 : vector<8x8x128xf32>
    %cst_6 = arith.constant dense<0xFF800000> : vector<8x128xf32>
    %24 = vector.multi_reduction <maximumf>, %23, %cst_6 [1] : vector<8x8x128xf32> to vector<8x128xf32>
    %c0_7 = arith.constant 0 : index
    %c0_8 = arith.constant 0 : index
    %25 = vector.load %arg4[%c0_7, %c0_8] : memref<8x128xf32, #tpu.memory_space<vmem>>, vector<8x128xf32>
    tpu.vector_store %arg4[%c0_7, %c0_8], %24 {strides = array<i32>} : memref<8x128xf32, #tpu.memory_space<vmem>>, vector<8x128xf32>,
    return
  }
  func.func @transform_0(%arg0: i32) -> (i32, i32) {
    %c0_i32 = arith.constant 0 : i32
    %c0_i32_0 = arith.constant 0 : i32
    return %arg0, %c0_i32 : i32, i32
  }
  func.func @transform_1(%arg0: i32) -> (i32, i32) {
    %c0_i32 = arith.constant 0 : i32
    %c0_i32_0 = arith.constant 0 : i32
    %c0_i32_1 = arith.constant 0 : i32
    return %c0_i32, %c0_i32_0 : i32, i32
  }
  func.func @transform_2(%arg0: i32) -> (i32, i32) {
    %c0_i32 = arith.constant 0 : i32
    %c0_i32_0 = arith.constant 0 : i32
    %c0_i32_1 = arith.constant 0 : i32
    return %c0_i32, %c0_i32_0 : i32, i32
  }
  func.func @transform_3(%arg0: i32) -> (i32, i32) {
    %c0_i32 = arith.constant 0 : i32
    %c0_i32_0 = arith.constant 0 : i32
    return %arg0, %c0_i32 : i32, i32
  }
}

module attributes {stable_mosaic.version = 11 : i64} {
  func.func @_bow_kernel(%arg0: i32, %arg1: memref<8x8xi32, #tpu.memory_space<vmem>>, %arg2: memref<128x128xbf16, #tpu.memory_space<vmem>>, %arg3: memref<1x128xf32, #tpu.memory_space<vmem>>, %arg4: memref<8x128xf32, #tpu.memory_space<vmem>>) attributes {dimension_semantics = [#tpu.dimension_semantics<parallel>], iteration_bounds = array<i64: 2>, scalar_prefetch = 0 : i64, scratch_operands = 0 : i64, tpu.core_type = #tpu.core_type<tc>, window_params = [{transform_indices = @transform_0, window_bounds = array<i64: 8, 8>}, {pipeline_mode = #tpu.pipeline_mode<synchronous>, transform_indices = @transform_1, window_bounds = array<i64: 128, 128>}, {pipeline_mode = #tpu.pipeline_mode<synchronous>, transform_indices = @transform_2, window_bounds = array<i64: 1, 128>}, {transform_indices = @transform_3, window_bounds = array<i64: 8, 128>}]} {
    %c0 = arith.constant 0 : index
    %c0_0 = arith.constant 0 : index
    %0 = vector.load %arg1[%c0, %c0_0] : memref<8x8xi32, #tpu.memory_space<vmem>>, vector<8x8xi32>
    %1 = tpu.iota {dimensions = array<i32: 2>} : vector<8x8x128xi32>
    %2 = vector.shape_cast %0 : vector<8x8xi32> to vector<8x8x1xi32>
    %3 = vector.broadcast %2 : vector<8x8x1xi32> to vector<8x8x128xi32>
    %4 = arith.cmpi eq, %3, %1 : vector<8x8x128xi32>
    %5 = arith.extui %4 : vector<8x8x128xi1> to vector<8x8x128xi32>
    %6 = arith.sitofp %5 : vector<8x8x128xi32> to vector<8x8x128xf32>
    %7 = arith.truncf %6 : vector<8x8x128xf32> to vector<8x8x128xbf16>
    %8 = vector.shape_cast %7 : vector<8x8x128xbf16> to vector<64x128xbf16>
    %c0_1 = arith.constant 0 : index
    %c0_2 = arith.constant 0 : index
    %9 = vector.load %arg2[%c0_1, %c0_2] : memref<128x128xbf16, #tpu.memory_space<vmem>>, vector<128x128xbf16>
    %cst = arith.constant dense<0.000000e+00> : vector<64x128xf32>
    %10 = tpu.matmul %8, %9, %cst {dimension_numbers = #tpu.dot_dimension_numbers<[1], [0], [0], [1], [0, 0, 1, 1], [], []>} : vector<64x128xbf16>, vector<128x128xbf16>, vector<64x128xf32> -> vector<64x128xf32>
    %c0_3 = arith.constant 0 : index
    %c0_4 = arith.constant 0 : index
    %11 = vector.load %arg3[%c0_3, %c0_4] : memref<1x128xf32, #tpu.memory_space<vmem>>, vector<1x128xf32>
    %12 = vector.broadcast %11 : vector<1x128xf32> to vector<64x128xf32>
    %13 = arith.addf %10, %12 : vector<64x128xf32>
    %cst_5 = arith.constant 0.000000e+00 : f32
    %14 = vector.broadcast %cst_5 : f32 to vector<64x128xf32>
    %15 = arith.maximumf %13, %14 : vector<64x128xf32>
    %c0_i32 = arith.constant 0 : i32
    %16 = vector.broadcast %c0_i32 : i32 to vector<8x8xi32>
    %17 = arith.cmpi ne, %0, %16 : vector<8x8xi32>
    %18 = arith.extui %17 : vector<8x8xi1> to vector<8x8xi32>
    %19 = arith.sitofp %18 : vector<8x8xi32> to vector<8x8xf32>
    %20 = vector.shape_cast %15 : vector<64x128xf32> to vector<8x8x128xf32>
    %21 = vector.shape_cast %19 : vector<8x8xf32> to vector<8x8x1xf32>
    %22 = vector.broadcast %21 : vector<8x8x1xf32> to vector<8x8x128xf32>
    %23 = arith.mulf %20, %22 : vector<8x8x128xf32>
    %cst_6 = arith.constant dense<0xFF800000> : vector<8x128xf32>
    %24 = vector.multi_reduction <maximumf>, %23, %cst_6 [1] : vector<8x8x128xf32> to vector<8x128xf32>
    %c0_7 = arith.constant 0 : index
    %c0_8 = arith.constant 0 : index
    %25 = vector.load %arg4[%c0_7, %c0_8] : memref<8x128xf32, #tpu.memory_space<vmem>>, vector<8x128xf32>
    tpu.vector_store %arg4[%c0_7, %c0_8], %24 {strides = array<i32>} : memref<8x128xf32, #tpu.memory_space<vmem>>, vector<8x128xf32>,
    return
  }
  func.func @transform_0(%arg0: i32) -> (i32, i32) {
    %c0_i32 = arith.constant 0 : i32
    %c0_i32_0 = arith.constant 0 : i32
    return %arg0, %c0_i32 : i32, i32
  }
  func.func @transform_1(%arg0: i32) -> (i32, i32) {
    %c0_i32 = arith.constant 0 : i32
    %c0_i32_0 = arith.constant 0 : i32
    %c0_i32_1 = arith.constant 0 : i32
    return %c0_i32, %c0_i32_0 : i32, i32
  }
  func.func @transform_2(%arg0: i32) -> (i32, i32) {
    %c0_i32 = arith.constant 0 : i32
    %c0_i32_0 = arith.constant 0 : i32
    %c0_i32_1 = arith.constant 0 : i32
    return %c0_i32, %c0_i32_0 : i32, i32
  }
  func.func @transform_3(%arg0: i32) -> (i32, i32) {
    %c0_i32 = arith.constant 0 : i32
    %c0_i32_0 = arith.constant 0 : i32
    return %arg0, %c0_i32 : i32, i32
  }
}

</mosaic_0001>

<llo_original>
// kernel: tpu_custom_call.1
$region0: #{tpu_custom_call.1}
  #allocation0 [shape = 'u32[]', space=smem, size = 0x4, offset = 0x4, fixed_abs, tag = 'smem constant byte address 0x4 - core index']
  #allocation1 [shape = 'u32[72,128]{1,0:T(1,128)}', space=vmem, size = 0x9000, scoped, tag = 'internal scratch']
  %s0 = inlined_call_operand.vmem [shape: s32[16,8], index: 0, kind: input, shape index: {}]
  %s1 = inlined_call_operand.hbm [shape: bf16[128,128], index: 1, kind: input, shape index: {}]
  %s2 = inlined_call_operand.vmem [shape: f32[1,128], index: 2, kind: input, shape index: {}]
  %s3 = inlined_call_operand.hbm [shape: f32[16,128], index: 3, kind: output, shape index: {}]
  %s4 = sld [smem:[#allocation0]]
  $region49: #{tpu_custom_call.1} parent=0
    _
  %s6 = ssub.s32 1, %s4
  %s7 = scalar_select 0, %s6, %s4
  $region1: #{tpu_custom_call.1} parent=0
    #allocation2 [shape = 'u8[32768]{0}', space=vmem, size = 0x8000, scoped, tag = 'input window, operand 1, single buffered']
    #allocation3 [shape = 's32[2]{0}', space=sflag, size = 0x8, scoped, tag = 'scoped memory for tpu_custom_call.1']
    #allocation4 [shape = 's32[2]{0}', space=sflag, size = 0x8, scoped, tag = 'scoped memory for tpu_custom_call.1']
    #allocation5 [shape = 'u8[8192]{0}', space=vmem, size = 0x2000, scoped, tag = 'output window, operand 0']
    %8 = vsyncpa [#allocation3], 0
    %9 = vsyncpa [#allocation4], 0
    %s10 = scalar_lea.sflag [#allocation4], 1
    %11 = vsyncpa %s10, 0
    loop: start=0, step=1, limit=4
    $region2: #{tpu_custom_call.1} parent=1 // loop_pre_header
      _
    $region3: #{tpu_custom_call.1} parent=1 // loop_header
      %s13 = sphi 0, %s17
      %p14 = scmp.ge.s32.totalorder %s13, 4
      %s23 = sphi 0, %s25
      %s26 = sphi 0, %s23
      %s27 = sphi 0, %s26
      %s43 = sphi 0, %s27
      %s47 = sphi 0, %s47
      %s49 = sphi 0, %s47
      %s50 = sphi 0, %s49
      %s64 = sphi 0, %s50
      %s68 = sphi 0, %s68
      %s70 = sphi 0, %s68
      %s71 = sphi 0, %s70
      %s85 = sphi 0, %s71
      %s91 = sphi 0, %s93
      %s94 = sphi 0, %s91
      %s95 = sphi 0, %s94
      %s111 = sphi 0, %s95
    $region4: #{tpu_custom_call.1} parent=1 // loop_header_branch
      %16 = sbr.rel (%p14) target = $region8
    $region5: #{tpu_custom_call.1} parent=1 // loop_body
      %s18 = ssub.s32 %s13, 1
      %s19 = ssub.s32 %s13, 2
      %s20 = sadd.s32 %s13, 1
      %s21 = ssub.s32 %s13, %s20
      %p22 = scmp.eq.s32.totalorder %s21, 0
      %s24 = sadd.s32 %s23, 1
      %s25 = scalar_select %p22, %s23, %s24
      %p28 = pneg %p22
      %p29 = scmp.eq.s32.totalorder %s13, 1
      %p30 = por %p28, %p29
      %p31 = scmp.ne.s32.totalorder %s23, %s26
      %p32 = scmp.eq.s32.totalorder %s13, 0
      %p33 = por %p31, %p32
      %p34 = scmp.ne.s32.totalorder %s23, %s26
      %p35 = scmp.eq.s32.totalorder %s18, 1
      %p36 = por %p34, %p35
      %p37 = scmp.ne.s32.totalorder %s26, %s27
      %p38 = scmp.eq.s32.totalorder %s18, 0
      %p39 = por %p37, %p38
      %p40 = scmp.ne.s32.totalorder %s26, %s27
      %p41 = scmp.eq.s32.totalorder %s19, 1
      %p42 = por %p40, %p41
      %p44 = scmp.ne.s32.totalorder %s27, %s43
      %p45 = scmp.eq.s32.totalorder %s19, 0
      %p46 = por %p44, %p45
      %s48 = sadd.s32 %s47, 1
      %p51 = scmp.eq.s32.totalorder %s13, 1
      %p52 = scmp.ne.s32.totalorder %s47, %s49
      %p53 = scmp.eq.s32.totalorder %s13, 0
      %p54 = por %p52, %p53
      %p55 = scmp.ne.s32.totalorder %s47, %s49
      %p56 = scmp.eq.s32.totalorder %s18, 1
      %p57 = por %p55, %p56
      %p58 = scmp.ne.s32.totalorder %s49, %s50
      %p59 = scmp.eq.s32.totalorder %s18, 0
      %p60 = por %p58, %p59
      %p61 = scmp.ne.s32.totalorder %s49, %s50
      %p62 = scmp.eq.s32.totalorder %s19, 1
      %p63 = por %p61, %p62
      %p65 = scmp.ne.s32.totalorder %s50, %s64
      %p66 = scmp.eq.s32.totalorder %s19, 0
      %p67 = por %p65, %p66
      %s69 = sadd.s32 %s68, 1
      %p72 = scmp.eq.s32.totalorder %s13, 1
      %p73 = scmp.ne.s32.totalorder %s68, %s70
      %p74 = scmp.eq.s32.totalorder %s13, 0
      %p75 = por %p73, %p74
      %p76 = scmp.ne.s32.totalorder %s68, %s70
      %p77 = scmp.eq.s32.totalorder %s18, 1
      %p78 = por %p76, %p77
      %p79 = scmp.ne.s32.totalorder %s70, %s71
      %p80 = scmp.eq.s32.totalorder %s18, 0
      %p81 = por %p79, %p80
      %p82 = scmp.ne.s32.totalorder %s70, %s71
      %p83 = scmp.eq.s32.totalorder %s19, 1
      %p84 = por %p82, %p83
      %p86 = scmp.ne.s32.totalorder %s71, %s85
      %p87 = scmp.eq.s32.totalorder %s19, 0
      %p88 = por %p86, %p87
      %s89 = ssub.s32 %s13, %s20
      %p90 = scmp.eq.s32.totalorder %s89, 0
      %s92 = sadd.s32 %s91, 1
      %s93 = scalar_select %p90, %s91, %s92
      %p96 = pneg %p90
      %p97 = scmp.eq.s32.totalorder %s13, 1
      %p98 = por %p96, %p97
      %p99 = scmp.ne.s32.totalorder %s91, %s94
      %p100 = scmp.eq.s32.totalorder %s13, 0
      %p101 = por %p99, %p100
      %p102 = scmp.ne.s32.totalorder %s91, %s94
      %p103 = scmp.eq.s32.totalorder %s18, 1
      %p104 = por %p102, %p103
      %p105 = scmp.ne.s32.totalorder %s94, %s95
      %p106 = scmp.eq.s32.totalorder %s18, 0
      %p107 = por %p105, %p106
      %p108 = scmp.ne.s32.totalorder %s94, %s95
      %p109 = scmp.eq.s32.totalorder %s19, 1
      %p110 = por %p108, %p109
      %p112 = scmp.ne.s32.totalorder %s95, %s111
      %p113 = scmp.eq.s32.totalorder %s19, 0
      %p114 = por %p112, %p113
      %p115 = scmp.le.s32.totalorder 1, %s13
      %p116 = scmp.lt.s32.totalorder %s13, 3
      %p117 = pnand %p115, %p116
      %p118 = pneg %p117
      // Predicated region
      $region9: #{tpu_custom_call.1} parent=5 // pred_check
        _
      $region10: #{tpu_custom_call.1} parent=5 // pred_check_branch
        %120 = sbr.rel (%p117) target = $region12
      $region11: #{tpu_custom_call.1} parent=5 // pred_region
        %s121 = ssub.s32 %s13, 1
        // Predicated region
        $region13: #{tpu_custom_call.1} parent=11 // pred_check
          %p122 = pneg %p60
        $region14: #{tpu_custom_call.1} parent=11 // pred_check_branch
          %124 = sbr.rel (%p122) target = $region16
        $region15: #{tpu_custom_call.1} parent=11 // pred_region
          %126 = vsyncadd [#allocation3], 0
          %s127 = sshll.u32 %s1, 4
          %s128 = int_to_ptr.hbm [resolvable:$true] %s127
          %s129 = sshll.u32 [#allocation2], 4
          %s130 = int_to_ptr.vmem [resolvable:$true] %s129
          %135 = dma.hbm_to_vmem [thread:$0]  %s128, 1024, %s130, [#allocation3], 64, 64, 4
        $region16: #{tpu_custom_call.1} parent=11 // pred_fallthru
          _
        // Predicated region
        $region17: #{tpu_custom_call.1} parent=11 // pred_check
          %p136 = pneg %p81
        $region18: #{tpu_custom_call.1} parent=11 // pred_check_branch
          %138 = sbr.rel (%p136) target = $region20
        $region19: #{tpu_custom_call.1} parent=11 // pred_region
          _
        $region20: #{tpu_custom_call.1} parent=11 // pred_fallthru
          _
      $region12: #{tpu_custom_call.1} parent=5 // pred_fallthru
        _
      %p139 = scmp.lt.s32.totalorder %s13, 2
      // Predicated region
      $region21: #{tpu_custom_call.1} parent=5 // pred_check
        %p140 = pneg %p139
      $region22: #{tpu_custom_call.1} parent=5 // pred_check_branch
        %142 = sbr.rel (%p140) target = $region24
      $region23: #{tpu_custom_call.1} parent=5 // pred_region
        // Predicated region
        $region25: #{tpu_custom_call.1} parent=23 // pred_check
          %p143 = pneg %p33
        $region26: #{tpu_custom_call.1} parent=23 // pred_check_branch
          %145 = sbr.rel (%p143) target = $region28
        $region27: #{tpu_custom_call.1} parent=23 // pred_region
          %p146 = scmp.lt.s32.totalorder %s13, 1
          %s147 = scalar_select %p146, %s13, 1
          %s148 = smul.addr %s147, 8
          %s149 = scalar_lea.vmem %s0, %s148
        $region28: #{tpu_custom_call.1} parent=23 // pred_fallthru
          _
      $region24: #{tpu_custom_call.1} parent=5 // pred_fallthru
        _
      %p150 = scmp.le.s32.totalorder 1, %s13
      %p151 = scmp.lt.s32.totalorder %s13, 3
      %p152 = pnand %p150, %p151
      %p153 = pneg %p152
      // Predicated region
      $region29: #{tpu_custom_call.1} parent=5 // pred_check
        _
      $region30: #{tpu_custom_call.1} parent=5 // pred_check_branch
        %155 = sbr.rel (%p152) target = $region32
      $region31: #{tpu_custom_call.1} parent=5 // pred_region
        %s156 = ssub.s32 %s13, 1
        // Predicated region
        $region33: #{tpu_custom_call.1} parent=31 // pred_check
          %p157 = pneg %p60
        $region34: #{tpu_custom_call.1} parent=31 // pred_check_branch
          %159 = sbr.rel (%p157) target = $region36
        $region35: #{tpu_custom_call.1} parent=31 // pred_region
          %161 = dma.done [#allocation3], 1024
        $region36: #{tpu_custom_call.1} parent=31 // pred_fallthru
          _
        %p162 = scmp.lt.s32.totalorder %s18, 1
        %s163 = scalar_select %p162, %s18, 1
        %s164 = smul.addr %s163, 8
        %s165 = scalar_lea.vmem %s0, %s164
        %p166 = pneg %p39
        %p167 = pneg %p36
        %p168 = pneg %p60
        %p169 = pneg %p57
        %p170 = pneg %p81
        %p171 = pneg %p78
        %p172 = pneg %p107
        %p173 = pneg %p104
        %s174 = sand.u32 %s94, 1
        %s175 = scalar_lea.sflag [#allocation4], %s174
        %s176 = sand.u32 %s94, 1
        %s177 = smul.addr %s176, 8
        %s178 = scalar_lea.vmem [#allocation5], %s177
        %p179 = scmp.lt.s32.totalorder %s18, 1
        %s180 = scalar_select %p179, %s18, 1
        %s181 = smul.addr %s180, 8
        %s182 = scalar_lea.vmem %s0, %s181
        %v183 = vld [vmem:[%s182] sm:$0xff]
        %v184 = vlaneseq
        %v185 = vand.u32 %v184, 127
        %v186 = vperm.slane %v183, 0
        %v187 = vlaneseq
        %v188 = vshrl.u32 %v187, 7
        %190 = vset.pattern.permute.xlu0 %v188
        %191 = vperm.xlu0 %190, %v186
        %v192 = vpop.permute.xlu0 %191
        %v193 = vperm.slane %v183, 1
        %v194 = vlaneseq
        %v195 = vshrl.u32 %v194, 7
        %197 = vset.pattern.permute.xlu0 %v195
        %198 = vperm.xlu0 %197, %v193
        %v199 = vpop.permute.xlu0 %198
        %v200 = vperm.slane %v183, 2
        %v201 = vlaneseq
        %v202 = vshrl.u32 %v201, 7
        %204 = vset.pattern.permute.xlu0 %v202
        %205 = vperm.xlu0 %204, %v200
        %v206 = vpop.permute.xlu0 %205
        %v207 = vperm.slane %v183, 3
        %v208 = vlaneseq
        %v209 = vshrl.u32 %v208, 7
        %211 = vset.pattern.permute.xlu0 %v209
        %212 = vperm.xlu0 %211, %v207
        %v213 = vpop.permute.xlu0 %212
        %v214 = vperm.slane %v183, 4
        %v215 = vlaneseq
        %v216 = vshrl.u32 %v215, 7
        %218 = vset.pattern.permute.xlu0 %v216
        %219 = vperm.xlu0 %218, %v214
        %v220 = vpop.permute.xlu0 %219
        %v221 = vperm.slane %v183, 5
        %v222 = vlaneseq
        %v223 = vshrl.u32 %v222, 7
        %225 = vset.pattern.permute.xlu0 %v223
        %226 = vperm.xlu0 %225, %v221
        %v227 = vpop.permute.xlu0 %226
        %v228 = vperm.slane %v183, 6
        %v229 = vlaneseq
        %v230 = vshrl.u32 %v229, 7
        %232 = vset.pattern.permute.xlu0 %v230
        %233 = vperm.xlu0 %232, %v228
        %v234 = vpop.permute.xlu0 %233
        %v235 = vperm.slane %v183, 7
        %v236 = vlaneseq
        %v237 = vshrl.u32 %v236, 7
        %239 = vset.pattern.permute.xlu0 %v237
        %240 = vperm.xlu0 %239, %v235
        %v241 = vpop.permute.xlu0 %240
        %vm242 = vcmp.eq.s32.totalorder %v192, %v185
        %vm243 = vcmp.eq.s32.totalorder %v199, %v185
        %vm244 = vcmp.eq.s32.totalorder %v206, %v185
        %vm245 = vcmp.eq.s32.totalorder %v213, %v185
        %vm246 = vcmp.eq.s32.totalorder %v220, %v185
        %vm247 = vcmp.eq.s32.totalorder %v227, %v185
        %vm248 = vcmp.eq.s32.totalorder %v234, %v185
        %vm249 = vcmp.eq.s32.totalorder %v241, %v185
        %v250 = vsel %vm242, 1, 0
        %v251 = vsel %vm243, 1, 0
        %v252 = vsel %vm244, 1, 0
        %v253 = vsel %vm245, 1, 0
        %v254 = vsel %vm246, 1, 0
        %v255 = vsel %vm247, 1, 0
        %v256 = vsel %vm248, 1, 0
        %v257 = vsel %vm249, 1, 0
        %v258 = vcvt.s32.f32 %v250
        %v259 = vcvt.s32.f32 %v251
        %v260 = vcvt.s32.f32 %v252
        %v261 = vcvt.s32.f32 %v253
        %v262 = vcvt.s32.f32 %v254
        %v263 = vcvt.s32.f32 %v255
        %v264 = vcvt.s32.f32 %v256
        %v265 = vcvt.s32.f32 %v257
        %v266 = vpack.c.bf16 %v258, %v258
        %v267 = vpack.c.bf16 %v259, %v259
        %v268 = vpack.c.bf16 %v260, %v260
        %v269 = vpack.c.bf16 %v261, %v261
        %v270 = vpack.c.bf16 %v262, %v262
        %v271 = vpack.c.bf16 %v263, %v263
        %v272 = vpack.c.bf16 %v264, %v264
        %v273 = vpack.c.bf16 %v265, %v265
        %v274 = vld [vmem:[#allocation2] sm:$0xf]
        %v275 = vld [vmem:[#allocation2 + $0x4] sm:$0xf]
        %v276 = vld [vmem:[#allocation2 + $0x8] sm:$0xf]
        %v277 = vld [vmem:[#allocation2 + $0xc] sm:$0xf]
        %v278 = vld [vmem:[#allocation2 + $0x10] sm:$0xf]
        %v279 = vld [vmem:[#allocation2 + $0x14] sm:$0xf]
        %v280 = vld [vmem:[#allocation2 + $0x18] sm:$0xf]
        %v281 = vld [vmem:[#allocation2 + $0x1c] sm:$0xf]
        %v282 = vld [vmem:[#allocation2 + $0x20] sm:$0xf]
        %v283 = vld [vmem:[#allocation2 + $0x24] sm:$0xf]
        %v284 = vld [vmem:[#allocation2 + $0x28] sm:$0xf]
        %v285 = vld [vmem:[#allocation2 + $0x2c] sm:$0xf]
        %v286 = vld [vmem:[#allocation2 + $0x30] sm:$0xf]
        %v287 = vld [vmem:[#allocation2 + $0x34] sm:$0xf]
        %v288 = vld [vmem:[#allocation2 + $0x38] sm:$0xf]
        %v289 = vld [vmem:[#allocation2 + $0x3c] sm:$0xf]
        %v290 = vld [vmem:[%s2] sm:$0x1]
        %v292 = vperm.slane %v290, 0
        %v302 = vunpack.c.l.b16 %v266
        %v303 = vunpack.c.l.b16 %v267
        %v304 = vunpack.c.l.b16 %v268
        %v305 = vunpack.c.l.b16 %v269
        %v306 = vunpack.c.l.b16 %v270
        %v307 = vunpack.c.l.b16 %v271
        %v308 = vunpack.c.l.b16 %v272
        %v309 = vunpack.c.l.b16 %v273
        %v310 = vpack.c.b16 %v303, %v302
        %v311 = vpack.c.b16 %v305, %v304
        %v312 = vpack.c.b16 %v307, %v306
        %v313 = vpack.c.b16 %v309, %v308
        %v334 = vunpack.c.l.b16 %v274
        %v335 = vunpack.c.l.b16 %v275
        %v336 = vunpack.c.l.b16 %v276
        %v337 = vunpack.c.l.b16 %v277
        %v338 = vunpack.c.l.b16 %v278
        %v339 = vunpack.c.l.b16 %v279
        %v340 = vunpack.c.l.b16 %v280
        %v341 = vunpack.c.l.b16 %v281
        %v342 = vunpack.c.l.b16 %v282
        %v343 = vunpack.c.l.b16 %v283
        %v344 = vunpack.c.l.b16 %v284
        %v345 = vunpack.c.l.b16 %v285
        %v346 = vunpack.c.l.b16 %v286
        %v347 = vunpack.c.l.b16 %v287
        %v348 = vunpack.c.l.b16 %v288
        %v349 = vunpack.c.l.b16 %v289
        %v350 = vpack.c.b16 %v335, %v334
        %v351 = vpack.c.b16 %v337, %v336
        %v352 = vpack.c.b16 %v339, %v338
        %v353 = vpack.c.b16 %v341, %v340
        %v354 = vpack.c.b16 %v343, %v342
        %v355 = vpack.c.b16 %v345, %v344
        %v356 = vpack.c.b16 %v347, %v346
        %v357 = vpack.c.b16 %v349, %v348
        %366 = vmatpush.bf16.msra.mxu0 %v357
        %367 = vmatpush.bf16.msra.mxu0 %v356
        %368 = vmatpush.bf16.msra.mxu0 %v355
        %369 = vmatpush.bf16.msra.mxu0 %v354
        %370 = vmatpush.bf16.msra.mxu0 %v353
        %371 = vmatpush.bf16.msra.mxu0 %v352
        %372 = vmatpush.bf16.msra.mxu0 %v351
        %373 = vmatpush.bf16.msra.mxu0 %v350
        %374 = vmatmul.bf16.gmra.mxu0 %v310
        %v375 = vpop.f32.mrf.mxu0
        %v376 = vadd.f32 %v292, %v375
        %v377 = vpop.f32.mrf.mxu0
        %v378 = vadd.f32 %v292, %v377
        %379 = vmatmul.bf16.gmra.mxu0 %v311
        %v380 = vpop.f32.mrf.mxu0
        %v381 = vadd.f32 %v292, %v380
        %v382 = vpop.f32.mrf.mxu0
        %v383 = vadd.f32 %v292, %v382
        %384 = vmatmul.bf16.gmra.mxu0 %v312
        %v385 = vpop.f32.mrf.mxu0
        %v386 = vadd.f32 %v292, %v385
        %v387 = vpop.f32.mrf.mxu0
        %v388 = vadd.f32 %v292, %v387
        %389 = vmatmul.bf16.gmra.mxu0 %v313
        %v390 = vpop.f32.mrf.mxu0
        %v391 = vadd.f32 %v292, %v390
        %v392 = vpop.f32.mrf.mxu0
        %v393 = vadd.f32 %v292, %v392
        %394 = vdwg.mxu0
        %v395 = vmax.f32 %v376, 0.0
        %v396 = vmax.f32 %v378, 0.0
        %v397 = vmax.f32 %v381, 0.0
        %v398 = vmax.f32 %v383, 0.0
        %v399 = vmax.f32 %v386, 0.0
        %v400 = vmax.f32 %v388, 0.0
        %v401 = vmax.f32 %v391, 0.0
        %v402 = vmax.f32 %v393, 0.0
        %vm403 = vcmp.ne.s32.totalorder %v183, 0
        %v404 = vsel %vm403, 1, 0
        %v405 = vcvt.s32.f32 %v404
        %v406 = vperm.slane %v405, 0
        %v407 = vlaneseq
        %v408 = vshrl.u32 %v407, 7
        %410 = vset.pattern.permute.xlu0 %v408
        %411 = vperm.xlu0 %410, %v406
        %v412 = vpop.permute.xlu0 %411
        %v413 = vperm.slane %v405, 1
        %v414 = vlaneseq
        %v415 = vshrl.u32 %v414, 7
        %417 = vset.pattern.permute.xlu0 %v415
        %418 = vperm.xlu0 %417, %v413
        %v419 = vpop.permute.xlu0 %418
        %v420 = vperm.slane %v405, 2
        %v421 = vlaneseq
        %v422 = vshrl.u32 %v421, 7
        %424 = vset.pattern.permute.xlu0 %v422
        %425 = vperm.xlu0 %424, %v420
        %v426 = vpop.permute.xlu0 %425
        %v427 = vperm.slane %v405, 3
        %v428 = vlaneseq
        %v429 = vshrl.u32 %v428, 7
        %431 = vset.pattern.permute.xlu0 %v429
        %432 = vperm.xlu0 %431, %v427
        %v433 = vpop.permute.xlu0 %432
        %v434 = vperm.slane %v405, 4
        %v435 = vlaneseq
        %v436 = vshrl.u32 %v435, 7
        %438 = vset.pattern.permute.xlu0 %v436
        %439 = vperm.xlu0 %438, %v434
        %v440 = vpop.permute.xlu0 %439
        %v441 = vperm.slane %v405, 5
        %v442 = vlaneseq
        %v443 = vshrl.u32 %v442, 7
        %445 = vset.pattern.permute.xlu0 %v443
        %446 = vperm.xlu0 %445, %v441
        %v447 = vpop.permute.xlu0 %446
        %v448 = vperm.slane %v405, 6
        %v449 = vlaneseq
        %v450 = vshrl.u32 %v449, 7
        %452 = vset.pattern.permute.xlu0 %v450
        %453 = vperm.xlu0 %452, %v448
        %v454 = vpop.permute.xlu0 %453
        %v455 = vperm.slane %v405, 7
        %v456 = vlaneseq
        %v457 = vshrl.u32 %v456, 7
        %459 = vset.pattern.permute.xlu0 %v457
        %460 = vperm.xlu0 %459, %v455
        %v461 = vpop.permute.xlu0 %460
        %v462 = vmul.f32 %v395, %v412
        %v463 = vmul.f32 %v396, %v419
        %v464 = vmul.f32 %v397, %v426
        %v465 = vmul.f32 %v398, %v433
        %v466 = vmul.f32 %v399, %v440
        %v467 = vmul.f32 %v400, %v447
        %v468 = vmul.f32 %v401, %v454
        %v469 = vmul.f32 %v402, %v461
        %v470 = vrot.slane %v462, 4
        %v471 = vmax.f32 %v462, %v470
        %v472 = vrot.slane %v471, 2
        %v473 = vmax.f32 %v471, %v472
        %v474 = vrot.slane %v473, 1
        %v475 = vmax.f32 %v473, %v474
        %v476 = vrot.slane %v463, 4
        %v477 = vmax.f32 %v463, %v476
        %v478 = vrot.slane %v477, 2
        %v479 = vmax.f32 %v477, %v478
        %v480 = vrot.slane %v479, 1
        %v481 = vmax.f32 %v479, %v480
        %v482 = vrot.slane %v464, 4
        %v483 = vmax.f32 %v464, %v482
        %v484 = vrot.slane %v483, 2
        %v485 = vmax.f32 %v483, %v484
        %v486 = vrot.slane %v485, 1
        %v487 = vmax.f32 %v485, %v486
        %v488 = vrot.slane %v465, 4
        %v489 = vmax.f32 %v465, %v488
        %v490 = vrot.slane %v489, 2
        %v491 = vmax.f32 %v489, %v490
        %v492 = vrot.slane %v491, 1
        %v493 = vmax.f32 %v491, %v492
        %v494 = vrot.slane %v466, 4
        %v495 = vmax.f32 %v466, %v494
        %v496 = vrot.slane %v495, 2
        %v497 = vmax.f32 %v495, %v496
        %v498 = vrot.slane %v497, 1
        %v499 = vmax.f32 %v497, %v498
        %v500 = vrot.slane %v467, 4
        %v501 = vmax.f32 %v467, %v500
        %v502 = vrot.slane %v501, 2
        %v503 = vmax.f32 %v501, %v502
        %v504 = vrot.slane %v503, 1
        %v505 = vmax.f32 %v503, %v504
        %v506 = vrot.slane %v468, 4
        %v507 = vmax.f32 %v468, %v506
        %v508 = vrot.slane %v507, 2
        %v509 = vmax.f32 %v507, %v508
        %v510 = vrot.slane %v509, 1
        %v511 = vmax.f32 %v509, %v510
        %v512 = vrot.slane %v469, 4
        %v513 = vmax.f32 %v469, %v512
        %v514 = vrot.slane %v513, 2
        %v515 = vmax.f32 %v513, %v514
        %v516 = vrot.slane %v515, 1
        %v517 = vmax.f32 %v515, %v516
        %vm526 = vcmask 1041409
        %v527 = vsel %vm526, %v481, %v475
        %vm528 = vcmask 1042434
        %v529 = vsel %vm528, %v487, %v527
        %vm530 = vcmask 1043459
        %v531 = vsel %vm530, %v493, %v529
        %vm532 = vcmask 1044484
        %v533 = vsel %vm532, %v499, %v531
        %vm534 = vcmask 1045509
        %v535 = vsel %vm534, %v505, %v533
        %vm536 = vcmask 1046534
        %v537 = vsel %vm536, %v511, %v535
        %vm538 = vcmask 1047559
        %v539 = vsel %vm538, %v517, %v537
        %541 = vst [vmem:[%s178] sm:$0xff] %v539
        %s542 = sand.u32 %s94, 1
        %s543 = scalar_lea.sflag [#allocation4], %s542
        %s544 = sand.u32 %s94, 1
        %s545 = smul.addr %s544, 8
        %s546 = scalar_lea.vmem [#allocation5], %s545
        // Predicated region
        $region37: #{tpu_custom_call.1} parent=31 // pred_check
          %p547 = pneg %p104
        $region38: #{tpu_custom_call.1} parent=31 // pred_check_branch
          %549 = sbr.rel (%p547) target = $region40
        $region39: #{tpu_custom_call.1} parent=31 // pred_region
          %551 = vsyncadd %s543, 0
          %s552 = smul.addr %s18, 8
          %s553 = scalar_lea.hbm %s3, %s552
          %s555 = sshll.u32 %s546, 4
          %s556 = int_to_ptr.vmem [resolvable:$true] %s555
          %s557 = sshll.u32 %s553, 4
          %s558 = int_to_ptr.hbm [resolvable:$true] %s557
          %560 = dma.vmem_to_hbm [thread:$0]  %s556, 128, %s558, %s543
        $region40: #{tpu_custom_call.1} parent=31 // pred_fallthru
          _
      $region32: #{tpu_custom_call.1} parent=5 // pred_fallthru
        _
      %p561 = scmp.le.s32.totalorder 2, %s13
      // Predicated region
      $region41: #{tpu_custom_call.1} parent=5 // pred_check
        %p562 = pneg %p561
      $region42: #{tpu_custom_call.1} parent=5 // pred_check_branch
        %564 = sbr.rel (%p562) target = $region44
      $region43: #{tpu_custom_call.1} parent=5 // pred_region
        %s565 = ssub.s32 %s13, 2
        // Predicated region
        $region45: #{tpu_custom_call.1} parent=43 // pred_check
          %p566 = pneg %p110
        $region46: #{tpu_custom_call.1} parent=43 // pred_check_branch
          %568 = sbr.rel (%p566) target = $region48
        $region47: #{tpu_custom_call.1} parent=43 // pred_region
          %s569 = sand.u32 %s95, 1
          %s570 = scalar_lea.sflag [#allocation4], %s569
          %s571 = sand.u32 %s95, 1
          %s572 = smul.addr %s571, 8
          %s573 = scalar_lea.vmem [#allocation5], %s572
          %575 = dma.done %s570, 128
        $region48: #{tpu_custom_call.1} parent=43 // pred_fallthru
          _
      $region44: #{tpu_custom_call.1} parent=5 // pred_fallthru
        _
    $region6: #{tpu_custom_call.1} parent=1 // loop_footer
      %s17 = sadd.s32 1, %s13
    $region7: #{tpu_custom_call.1} parent=1 // loop_footer_branch
      %12 = sbr.rel target = $region3
    $region8: #{tpu_custom_call.1} parent=1 // loop_exit
      _
    %576 = vsyncpa [#allocation3], 1
    %s577 = scalar_lea.sflag [#allocation3], 1
    %578 = vsyncpa %s577, 1
    %579 = vsyncpa [#allocation4], 1
    %s580 = scalar_lea.sflag [#allocation4], 1
    %581 = vsyncpa %s580, 1

// kernel: tpu_custom_call.1
$region0: #{tpu_custom_call.1}
  #allocation0 [shape = 'u32[]', space=smem, size = 0x4, offset = 0x4, fixed_abs, tag = 'smem constant byte address 0x4 - core index']
  #allocation1 [shape = 'u32[72,128]{1,0:T(1,128)}', space=vmem, size = 0x9000, scoped, tag = 'internal scratch']
  %s0 = inlined_call_operand.vmem [shape: s32[16,8], index: 0, kind: input, shape index: {}]
  %s1 = inlined_call_operand.hbm [shape: bf16[128,128], index: 1, kind: input, shape index: {}]
  %s2 = inlined_call_operand.vmem [shape: f32[1,128], index: 2, kind: input, shape index: {}]
  %s3 = inlined_call_operand.hbm [shape: f32[16,128], index: 3, kind: output, shape index: {}]
  %s4 = sld [smem:[#allocation0]]
  $region49: #{tpu_custom_call.1} parent=0
    _
  %s6 = ssub.s32 1, %s4
  %s7 = scalar_select 0, %s6, %s4
  $region1: #{tpu_custom_call.1} parent=0
    #allocation2 [shape = 'u8[32768]{0}', space=vmem, size = 0x8000, scoped, tag = 'input window, operand 1, single buffered']
    #allocation3 [shape = 's32[2]{0}', space=sflag, size = 0x8, scoped, tag = 'scoped memory for tpu_custom_call.1']
    #allocation4 [shape = 's32[2]{0}', space=sflag, size = 0x8, scoped, tag = 'scoped memory for tpu_custom_call.1']
    #allocation5 [shape = 'u8[8192]{0}', space=vmem, size = 0x2000, scoped, tag = 'output window, operand 0']
    %8 = vsyncpa [#allocation3], 0
    %9 = vsyncpa [#allocation4], 0
    %s10 = scalar_lea.sflag [#allocation4], 1
    %11 = vsyncpa %s10, 0
    loop: start=0, step=1, limit=4
    $region2: #{tpu_custom_call.1} parent=1 // loop_pre_header
      _
    $region3: #{tpu_custom_call.1} parent=1 // loop_header
      %s13 = sphi 0, %s17
      %p14 = scmp.ge.s32.totalorder %s13, 4
      %s23 = sphi 0, %s25
      %s26 = sphi 0, %s23
      %s27 = sphi 0, %s26
      %s43 = sphi 0, %s27
      %s47 = sphi 0, %s47
      %s49 = sphi 0, %s47
      %s50 = sphi 0, %s49
      %s64 = sphi 0, %s50
      %s68 = sphi 0, %s68
      %s70 = sphi 0, %s68
      %s71 = sphi 0, %s70
      %s85 = sphi 0, %s71
      %s91 = sphi 0, %s93
      %s94 = sphi 0, %s91
      %s95 = sphi 0, %s94
      %s111 = sphi 0, %s95
    $region4: #{tpu_custom_call.1} parent=1 // loop_header_branch
      %16 = sbr.rel (%p14) target = $region8
    $region5: #{tpu_custom_call.1} parent=1 // loop_body
      %s18 = ssub.s32 %s13, 1
      %s19 = ssub.s32 %s13, 2
      %s20 = sadd.s32 %s13, 1
      %s21 = ssub.s32 %s13, %s20
      %p22 = scmp.eq.s32.totalorder %s21, 0
      %s24 = sadd.s32 %s23, 1
      %s25 = scalar_select %p22, %s23, %s24
      %p28 = pneg %p22
      %p29 = scmp.eq.s32.totalorder %s13, 1
      %p30 = por %p28, %p29
      %p31 = scmp.ne.s32.totalorder %s23, %s26
      %p32 = scmp.eq.s32.totalorder %s13, 0
      %p33 = por %p31, %p32
      %p34 = scmp.ne.s32.totalorder %s23, %s26
      %p35 = scmp.eq.s32.totalorder %s18, 1
      %p36 = por %p34, %p35
      %p37 = scmp.ne.s32.totalorder %s26, %s27
      %p38 = scmp.eq.s32.totalorder %s18, 0
      %p39 = por %p37, %p38
      %p40 = scmp.ne.s32.totalorder %s26, %s27
      %p41 = scmp.eq.s32.totalorder %s19, 1
      %p42 = por %p40, %p41
      %p44 = scmp.ne.s32.totalorder %s27, %s43
      %p45 = scmp.eq.s32.totalorder %s19, 0
      %p46 = por %p44, %p45
      %s48 = sadd.s32 %s47, 1
      %p51 = scmp.eq.s32.totalorder %s13, 1
      %p52 = scmp.ne.s32.totalorder %s47, %s49
      %p53 = scmp.eq.s32.totalorder %s13, 0
      %p54 = por %p52, %p53
      %p55 = scmp.ne.s32.totalorder %s47, %s49
      %p56 = scmp.eq.s32.totalorder %s18, 1
      %p57 = por %p55, %p56
      %p58 = scmp.ne.s32.totalorder %s49, %s50
      %p59 = scmp.eq.s32.totalorder %s18, 0
      %p60 = por %p58, %p59
      %p61 = scmp.ne.s32.totalorder %s49, %s50
      %p62 = scmp.eq.s32.totalorder %s19, 1
      %p63 = por %p61, %p62
      %p65 = scmp.ne.s32.totalorder %s50, %s64
      %p66 = scmp.eq.s32.totalorder %s19, 0
      %p67 = por %p65, %p66
      %s69 = sadd.s32 %s68, 1
      %p72 = scmp.eq.s32.totalorder %s13, 1
      %p73 = scmp.ne.s32.totalorder %s68, %s70
      %p74 = scmp.eq.s32.totalorder %s13, 0
      %p75 = por %p73, %p74
      %p76 = scmp.ne.s32.totalorder %s68, %s70
      %p77 = scmp.eq.s32.totalorder %s18, 1
      %p78 = por %p76, %p77
      %p79 = scmp.ne.s32.totalorder %s70, %s71
      %p80 = scmp.eq.s32.totalorder %s18, 0
      %p81 = por %p79, %p80
      %p82 = scmp.ne.s32.totalorder %s70, %s71
      %p83 = scmp.eq.s32.totalorder %s19, 1
      %p84 = por %p82, %p83
      %p86 = scmp.ne.s32.totalorder %s71, %s85
      %p87 = scmp.eq.s32.totalorder %s19, 0
      %p88 = por %p86, %p87
      %s89 = ssub.s32 %s13, %s20
      %p90 = scmp.eq.s32.totalorder %s89, 0
      %s92 = sadd.s32 %s91, 1
      %s93 = scalar_select %p90, %s91, %s92
      %p96 = pneg %p90
      %p97 = scmp.eq.s32.totalorder %s13, 1
      %p98 = por %p96, %p97
      %p99 = scmp.ne.s32.totalorder %s91, %s94
      %p100 = scmp.eq.s32.totalorder %s13, 0
      %p101 = por %p99, %p100
      %p102 = scmp.ne.s32.totalorder %s91, %s94
      %p103 = scmp.eq.s32.totalorder %s18, 1
      %p104 = por %p102, %p103
      %p105 = scmp.ne.s32.totalorder %s94, %s95
      %p106 = scmp.eq.s32.totalorder %s18, 0
      %p107 = por %p105, %p106
      %p108 = scmp.ne.s32.totalorder %s94, %s95
      %p109 = scmp.eq.s32.totalorder %s19, 1
      %p110 = por %p108, %p109
      %p112 = scmp.ne.s32.totalorder %s95, %s111
      %p113 = scmp.eq.s32.totalorder %s19, 0
      %p114 = por %p112, %p113
      %p115 = scmp.le.s32.totalorder 1, %s13
      %p116 = scmp.lt.s32.totalorder %s13, 3
      %p117 = pnand %p115, %p116
      %p118 = pneg %p117
      // Predicated region
      $region9: #{tpu_custom_call.1} parent=5 // pred_check
        _
      $region10: #{tpu_custom_call.1} parent=5 // pred_check_branch
        %120 = sbr.rel (%p117) target = $region12
      $region11: #{tpu_custom_call.1} parent=5 // pred_region
        %s121 = ssub.s32 %s13, 1
        // Predicated region
        $region13: #{tpu_custom_call.1} parent=11 // pred_check
          %p122 = pneg %p60
        $region14: #{tpu_custom_call.1} parent=11 // pred_check_branch
          %124 = sbr.rel (%p122) target = $region16
        $region15: #{tpu_custom_call.1} parent=11 // pred_region
          %126 = vsyncadd [#allocation3], 0
          %s127 = sshll.u32 %s1, 4
          %s128 = int_to_ptr.hbm [resolvable:$true] %s127
          %s129 = sshll.u32 [#allocation2], 4
          %s130 = int_to_ptr.vmem [resolvable:$true] %s129
          %135 = dma.hbm_to_vmem [thread:$0]  %s128, 1024, %s130, [#allocation3], 64, 64, 4
        $region16: #{tpu_custom_call.1} parent=11 // pred_fallthru
          _
        // Predicated region
        $region17: #{tpu_custom_call.1} parent=11 // pred_check
          %p136 = pneg %p81
        $region18: #{tpu_custom_call.1} parent=11 // pred_check_branch
          %138 = sbr.rel (%p136) target = $region20
        $region19: #{tpu_custom_call.1} parent=11 // pred_region
          _
        $region20: #{tpu_custom_call.1} parent=11 // pred_fallthru
          _
      $region12: #{tpu_custom_call.1} parent=5 // pred_fallthru
        _
      %p139 = scmp.lt.s32.totalorder %s13, 2
      // Predicated region
      $region21: #{tpu_custom_call.1} parent=5 // pred_check
        %p140 = pneg %p139
      $region22: #{tpu_custom_call.1} parent=5 // pred_check_branch
        %142 = sbr.rel (%p140) target = $region24
      $region23: #{tpu_custom_call.1} parent=5 // pred_region
        // Predicated region
        $region25: #{tpu_custom_call.1} parent=23 // pred_check
          %p143 = pneg %p33
        $region26: #{tpu_custom_call.1} parent=23 // pred_check_branch
          %145 = sbr.rel (%p143) target = $region28
        $region27: #{tpu_custom_call.1} parent=23 // pred_region
          %p146 = scmp.lt.s32.totalorder %s13, 1
          %s147 = scalar_select %p146, %s13, 1
          %s148 = smul.addr %s147, 8
          %s149 = scalar_lea.vmem %s0, %s148
        $region28: #{tpu_custom_call.1} parent=23 // pred_fallthru
          _
      $region24: #{tpu_custom_call.1} parent=5 // pred_fallthru
        _
      %p150 = scmp.le.s32.totalorder 1, %s13
      %p151 = scmp.lt.s32.totalorder %s13, 3
      %p152 = pnand %p150, %p151
      %p153 = pneg %p152
      // Predicated region
      $region29: #{tpu_custom_call.1} parent=5 // pred_check
        _
      $region30: #{tpu_custom_call.1} parent=5 // pred_check_branch
        %155 = sbr.rel (%p152) target = $region32
      $region31: #{tpu_custom_call.1} parent=5 // pred_region
        %s156 = ssub.s32 %s13, 1
        // Predicated region
        $region33: #{tpu_custom_call.1} parent=31 // pred_check
          %p157 = pneg %p60
        $region34: #{tpu_custom_call.1} parent=31 // pred_check_branch
          %159 = sbr.rel (%p157) target = $region36
        $region35: #{tpu_custom_call.1} parent=31 // pred_region
          %161 = dma.done [#allocation3], 1024
        $region36: #{tpu_custom_call.1} parent=31 // pred_fallthru
          _
        %p162 = scmp.lt.s32.totalorder %s18, 1
        %s163 = scalar_select %p162, %s18, 1
        %s164 = smul.addr %s163, 8
        %s165 = scalar_lea.vmem %s0, %s164
        %p166 = pneg %p39
        %p167 = pneg %p36
        %p168 = pneg %p60
        %p169 = pneg %p57
        %p170 = pneg %p81
        %p171 = pneg %p78
        %p172 = pneg %p107
        %p173 = pneg %p104
        %s174 = sand.u32 %s94, 1
        %s175 = scalar_lea.sflag [#allocation4], %s174
        %s176 = sand.u32 %s94, 1
        %s177 = smul.addr %s176, 8
        %s178 = scalar_lea.vmem [#allocation5], %s177
        %p179 = scmp.lt.s32.totalorder %s18, 1
        %s180 = scalar_select %p179, %s18, 1
        %s181 = smul.addr %s180, 8
        %s182 = scalar_lea.vmem %s0, %s181
        %v183 = vld [vmem:[%s182] sm:$0xff]
        %v184 = vlaneseq
        %v185 = vand.u32 %v184, 127
        %v186 = vperm.slane %v183, 0
        %v187 = vlaneseq
        %v188 = vshrl.u32 %v187, 7
        %190 = vset.pattern.permute.xlu0 %v188
        %191 = vperm.xlu0 %190, %v186
        %v192 = vpop.permute.xlu0 %191
        %v193 = vperm.slane %v183, 1
        %v194 = vlaneseq
        %v195 = vshrl.u32 %v194, 7
        %197 = vset.pattern.permute.xlu0 %v195
        %198 = vperm.xlu0 %197, %v193
        %v199 = vpop.permute.xlu0 %198
        %v200 = vperm.slane %v183, 2
        %v201 = vlaneseq
        %v202 = vshrl.u32 %v201, 7
        %204 = vset.pattern.permute.xlu0 %v202
        %205 = vperm.xlu0 %204, %v200
        %v206 = vpop.permute.xlu0 %205
        %v207 = vperm.slane %v183, 3
        %v208 = vlaneseq
        %v209 = vshrl.u32 %v208, 7
        %211 = vset.pattern.permute.xlu0 %v209
        %212 = vperm.xlu0 %211, %v207
        %v213 = vpop.permute.xlu0 %212
        %v214 = vperm.slane %v183, 4
        %v215 = vlaneseq
        %v216 = vshrl.u32 %v215, 7
        %218 = vset.pattern.permute.xlu0 %v216
        %219 = vperm.xlu0 %218, %v214
        %v220 = vpop.permute.xlu0 %219
        %v221 = vperm.slane %v183, 5
        %v222 = vlaneseq
        %v223 = vshrl.u32 %v222, 7
        %225 = vset.pattern.permute.xlu0 %v223
        %226 = vperm.xlu0 %225, %v221
        %v227 = vpop.permute.xlu0 %226
        %v228 = vperm.slane %v183, 6
        %v229 = vlaneseq
        %v230 = vshrl.u32 %v229, 7
        %232 = vset.pattern.permute.xlu0 %v230
        %233 = vperm.xlu0 %232, %v228
        %v234 = vpop.permute.xlu0 %233
        %v235 = vperm.slane %v183, 7
        %v236 = vlaneseq
        %v237 = vshrl.u32 %v236, 7
        %239 = vset.pattern.permute.xlu0 %v237
        %240 = vperm.xlu0 %239, %v235
        %v241 = vpop.permute.xlu0 %240
        %vm242 = vcmp.eq.s32.totalorder %v192, %v185
        %vm243 = vcmp.eq.s32.totalorder %v199, %v185
        %vm244 = vcmp.eq.s32.totalorder %v206, %v185
        %vm245 = vcmp.eq.s32.totalorder %v213, %v185
        %vm246 = vcmp.eq.s32.totalorder %v220, %v185
        %vm247 = vcmp.eq.s32.totalorder %v227, %v185
        %vm248 = vcmp.eq.s32.totalorder %v234, %v185
        %vm249 = vcmp.eq.s32.totalorder %v241, %v185
        %v250 = vsel %vm242, 1, 0
        %v251 = vsel %vm243, 1, 0
        %v252 = vsel %vm244, 1, 0
        %v253 = vsel %vm245, 1, 0
        %v254 = vsel %vm246, 1, 0
        %v255 = vsel %vm247, 1, 0
        %v256 = vsel %vm248, 1, 0
        %v257 = vsel %vm249, 1, 0
        %v258 = vcvt.s32.f32 %v250
        %v259 = vcvt.s32.f32 %v251
        %v260 = vcvt.s32.f32 %v252
        %v261 = vcvt.s32.f32 %v253
        %v262 = vcvt.s32.f32 %v254
        %v263 = vcvt.s32.f32 %v255
        %v264 = vcvt.s32.f32 %v256
        %v265 = vcvt.s32.f32 %v257
        %v266 = vpack.c.bf16 %v258, %v258
        %v267 = vpack.c.bf16 %v259, %v259
        %v268 = vpack.c.bf16 %v260, %v260
        %v269 = vpack.c.bf16 %v261, %v261
        %v270 = vpack.c.bf16 %v262, %v262
        %v271 = vpack.c.bf16 %v263, %v263
        %v272 = vpack.c.bf16 %v264, %v264
        %v273 = vpack.c.bf16 %v265, %v265
        %v274 = vld [vmem:[#allocation2] sm:$0xf]
        %v275 = vld [vmem:[#allocation2 + $0x4] sm:$0xf]
        %v276 = vld [vmem:[#allocation2 + $0x8] sm:$0xf]
        %v277 = vld [vmem:[#allocation2 + $0xc] sm:$0xf]
        %v278 = vld [vmem:[#allocation2 + $0x10] sm:$0xf]
        %v279 = vld [vmem:[#allocation2 + $0x14] sm:$0xf]
        %v280 = vld [vmem:[#allocation2 + $0x18] sm:$0xf]
        %v281 = vld [vmem:[#allocation2 + $0x1c] sm:$0xf]
        %v282 = vld [vmem:[#allocation2 + $0x20] sm:$0xf]
        %v283 = vld [vmem:[#allocation2 + $0x24] sm:$0xf]
        %v284 = vld [vmem:[#allocation2 + $0x28] sm:$0xf]
        %v285 = vld [vmem:[#allocation2 + $0x2c] sm:$0xf]
        %v286 = vld [vmem:[#allocation2 + $0x30] sm:$0xf]
        %v287 = vld [vmem:[#allocation2 + $0x34] sm:$0xf]
        %v288 = vld [vmem:[#allocation2 + $0x38] sm:$0xf]
        %v289 = vld [vmem:[#allocation2 + $0x3c] sm:$0xf]
        %v290 = vld [vmem:[%s2] sm:$0x1]
        %v292 = vperm.slane %v290, 0
        %v302 = vunpack.c.l.b16 %v266
        %v303 = vunpack.c.l.b16 %v267
        %v304 = vunpack.c.l.b16 %v268
        %v305 = vunpack.c.l.b16 %v269
        %v306 = vunpack.c.l.b16 %v270
        %v307 = vunpack.c.l.b16 %v271
        %v308 = vunpack.c.l.b16 %v272
        %v309 = vunpack.c.l.b16 %v273
        %v310 = vpack.c.b16 %v303, %v302
        %v311 = vpack.c.b16 %v305, %v304
        %v312 = vpack.c.b16 %v307, %v306
        %v313 = vpack.c.b16 %v309, %v308
        %v334 = vunpack.c.l.b16 %v274
        %v335 = vunpack.c.l.b16 %v275
        %v336 = vunpack.c.l.b16 %v276
        %v337 = vunpack.c.l.b16 %v277
        %v338 = vunpack.c.l.b16 %v278
        %v339 = vunpack.c.l.b16 %v279
        %v340 = vunpack.c.l.b16 %v280
        %v341 = vunpack.c.l.b16 %v281
        %v342 = vunpack.c.l.b16 %v282
        %v343 = vunpack.c.l.b16 %v283
        %v344 = vunpack.c.l.b16 %v284
        %v345 = vunpack.c.l.b16 %v285
        %v346 = vunpack.c.l.b16 %v286
        %v347 = vunpack.c.l.b16 %v287
        %v348 = vunpack.c.l.b16 %v288
        %v349 = vunpack.c.l.b16 %v289
        %v350 = vpack.c.b16 %v335, %v334
        %v351 = vpack.c.b16 %v337, %v336
        %v352 = vpack.c.b16 %v339, %v338
        %v353 = vpack.c.b16 %v341, %v340
        %v354 = vpack.c.b16 %v343, %v342
        %v355 = vpack.c.b16 %v345, %v344
        %v356 = vpack.c.b16 %v347, %v346
        %v357 = vpack.c.b16 %v349, %v348
        %366 = vmatpush.bf16.msra.mxu0 %v357
        %367 = vmatpush.bf16.msra.mxu0 %v356
        %368 = vmatpush.bf16.msra.mxu0 %v355
        %369 = vmatpush.bf16.msra.mxu0 %v354
        %370 = vmatpush.bf16.msra.mxu0 %v353
        %371 = vmatpush.bf16.msra.mxu0 %v352
        %372 = vmatpush.bf16.msra.mxu0 %v351
        %373 = vmatpush.bf16.msra.mxu0 %v350
        %374 = vmatmul.bf16.gmra.mxu0 %v310
        %v375 = vpop.f32.mrf.mxu0
        %v376 = vadd.f32 %v292, %v375
        %v377 = vpop.f32.mrf.mxu0
        %v378 = vadd.f32 %v292, %v377
        %379 = vmatmul.bf16.gmra.mxu0 %v311
        %v380 = vpop.f32.mrf.mxu0
        %v381 = vadd.f32 %v292, %v380
        %v382 = vpop.f32.mrf.mxu0
        %v383 = vadd.f32 %v292, %v382
        %384 = vmatmul.bf16.gmra.mxu0 %v312
        %v385 = vpop.f32.mrf.mxu0
        %v386 = vadd.f32 %v292, %v385
        %v387 = vpop.f32.mrf.mxu0
        %v388 = vadd.f32 %v292, %v387
        %389 = vmatmul.bf16.gmra.mxu0 %v313
        %v390 = vpop.f32.mrf.mxu0
        %v391 = vadd.f32 %v292, %v390
        %v392 = vpop.f32.mrf.mxu0
        %v393 = vadd.f32 %v292, %v392
        %394 = vdwg.mxu0
        %v395 = vmax.f32 %v376, 0.0
        %v396 = vmax.f32 %v378, 0.0
        %v397 = vmax.f32 %v381, 0.0
        %v398 = vmax.f32 %v383, 0.0
        %v399 = vmax.f32 %v386, 0.0
        %v400 = vmax.f32 %v388, 0.0
        %v401 = vmax.f32 %v391, 0.0
        %v402 = vmax.f32 %v393, 0.0
        %vm403 = vcmp.ne.s32.totalorder %v183, 0
        %v404 = vsel %vm403, 1, 0
        %v405 = vcvt.s32.f32 %v404
        %v406 = vperm.slane %v405, 0
        %v407 = vlaneseq
        %v408 = vshrl.u32 %v407, 7
        %410 = vset.pattern.permute.xlu0 %v408
        %411 = vperm.xlu0 %410, %v406
        %v412 = vpop.permute.xlu0 %411
        %v413 = vperm.slane %v405, 1
        %v414 = vlaneseq
        %v415 = vshrl.u32 %v414, 7
        %417 = vset.pattern.permute.xlu0 %v415
        %418 = vperm.xlu0 %417, %v413
        %v419 = vpop.permute.xlu0 %418
        %v420 = vperm.slane %v405, 2
        %v421 = vlaneseq
        %v422 = vshrl.u32 %v421, 7
        %424 = vset.pattern.permute.xlu0 %v422
        %425 = vperm.xlu0 %424, %v420
        %v426 = vpop.permute.xlu0 %425
        %v427 = vperm.slane %v405, 3
        %v428 = vlaneseq
        %v429 = vshrl.u32 %v428, 7
        %431 = vset.pattern.permute.xlu0 %v429
        %432 = vperm.xlu0 %431, %v427
        %v433 = vpop.permute.xlu0 %432
        %v434 = vperm.slane %v405, 4
        %v435 = vlaneseq
        %v436 = vshrl.u32 %v435, 7
        %438 = vset.pattern.permute.xlu0 %v436
        %439 = vperm.xlu0 %438, %v434
        %v440 = vpop.permute.xlu0 %439
        %v441 = vperm.slane %v405, 5
        %v442 = vlaneseq
        %v443 = vshrl.u32 %v442, 7
        %445 = vset.pattern.permute.xlu0 %v443
        %446 = vperm.xlu0 %445, %v441
        %v447 = vpop.permute.xlu0 %446
        %v448 = vperm.slane %v405, 6
        %v449 = vlaneseq
        %v450 = vshrl.u32 %v449, 7
        %452 = vset.pattern.permute.xlu0 %v450
        %453 = vperm.xlu0 %452, %v448
        %v454 = vpop.permute.xlu0 %453
        %v455 = vperm.slane %v405, 7
        %v456 = vlaneseq
        %v457 = vshrl.u32 %v456, 7
        %459 = vset.pattern.permute.xlu0 %v457
        %460 = vperm.xlu0 %459, %v455
        %v461 = vpop.permute.xlu0 %460
        %v462 = vmul.f32 %v395, %v412
        %v463 = vmul.f32 %v396, %v419
        %v464 = vmul.f32 %v397, %v426
        %v465 = vmul.f32 %v398, %v433
        %v466 = vmul.f32 %v399, %v440
        %v467 = vmul.f32 %v400, %v447
        %v468 = vmul.f32 %v401, %v454
        %v469 = vmul.f32 %v402, %v461
        %v470 = vrot.slane %v462, 4
        %v471 = vmax.f32 %v462, %v470
        %v472 = vrot.slane %v471, 2
        %v473 = vmax.f32 %v471, %v472
        %v474 = vrot.slane %v473, 1
        %v475 = vmax.f32 %v473, %v474
        %v476 = vrot.slane %v463, 4
        %v477 = vmax.f32 %v463, %v476
        %v478 = vrot.slane %v477, 2
        %v479 = vmax.f32 %v477, %v478
        %v480 = vrot.slane %v479, 1
        %v481 = vmax.f32 %v479, %v480
        %v482 = vrot.slane %v464, 4
        %v483 = vmax.f32 %v464, %v482
        %v484 = vrot.slane %v483, 2
        %v485 = vmax.f32 %v483, %v484
        %v486 = vrot.slane %v485, 1
        %v487 = vmax.f32 %v485, %v486
        %v488 = vrot.slane %v465, 4
        %v489 = vmax.f32 %v465, %v488
        %v490 = vrot.slane %v489, 2
        %v491 = vmax.f32 %v489, %v490
        %v492 = vrot.slane %v491, 1
        %v493 = vmax.f32 %v491, %v492
        %v494 = vrot.slane %v466, 4
        %v495 = vmax.f32 %v466, %v494
        %v496 = vrot.slane %v495, 2
        %v497 = vmax.f32 %v495, %v496
        %v498 = vrot.slane %v497, 1
        %v499 = vmax.f32 %v497, %v498
        %v500 = vrot.slane %v467, 4
        %v501 = vmax.f32 %v467, %v500
        %v502 = vrot.slane %v501, 2
        %v503 = vmax.f32 %v501, %v502
        %v504 = vrot.slane %v503, 1
        %v505 = vmax.f32 %v503, %v504
        %v506 = vrot.slane %v468, 4
        %v507 = vmax.f32 %v468, %v506
        %v508 = vrot.slane %v507, 2
        %v509 = vmax.f32 %v507, %v508
        %v510 = vrot.slane %v509, 1
        %v511 = vmax.f32 %v509, %v510
        %v512 = vrot.slane %v469, 4
        %v513 = vmax.f32 %v469, %v512
        %v514 = vrot.slane %v513, 2
        %v515 = vmax.f32 %v513, %v514
        %v516 = vrot.slane %v515, 1
        %v517 = vmax.f32 %v515, %v516
        %vm526 = vcmask 1041409
        %v527 = vsel %vm526, %v481, %v475
        %vm528 = vcmask 1042434
        %v529 = vsel %vm528, %v487, %v527
        %vm530 = vcmask 1043459
        %v531 = vsel %vm530, %v493, %v529
        %vm532 = vcmask 1044484
        %v533 = vsel %vm532, %v499, %v531
        %vm534 = vcmask 1045509
        %v535 = vsel %vm534, %v505, %v533
        %vm536 = vcmask 1046534
        %v537 = vsel %vm536, %v511, %v535
        %vm538 = vcmask 1047559
        %v539 = vsel %vm538, %v517, %v537
        %541 = vst [vmem:[%s178] sm:$0xff] %v539
        %s542 = sand.u32 %s94, 1
        %s543 = scalar_lea.sflag [#allocation4], %s542
        %s544 = sand.u32 %s94, 1
        %s545 = smul.addr %s544, 8
        %s546 = scalar_lea.vmem [#allocation5], %s545
        // Predicated region
        $region37: #{tpu_custom_call.1} parent=31 // pred_check
          %p547 = pneg %p104
        $region38: #{tpu_custom_call.1} parent=31 // pred_check_branch
          %549 = sbr.rel (%p547) target = $region40
        $region39: #{tpu_custom_call.1} parent=31 // pred_region
          %551 = vsyncadd %s543, 0
          %s552 = smul.addr %s18, 8
          %s553 = scalar_lea.hbm %s3, %s552
          %s555 = sshll.u32 %s546, 4
          %s556 = int_to_ptr.vmem [resolvable:$true] %s555
          %s557 = sshll.u32 %s553, 4
          %s558 = int_to_ptr.hbm [resolvable:$true] %s557
          %560 = dma.vmem_to_hbm [thread:$0]  %s556, 128, %s558, %s543
        $region40: #{tpu_custom_call.1} parent=31 // pred_fallthru
          _
      $region32: #{tpu_custom_call.1} parent=5 // pred_fallthru
        _
      %p561 = scmp.le.s32.totalorder 2, %s13
      // Predicated region
      $region41: #{tpu_custom_call.1} parent=5 // pred_check
        %p562 = pneg %p561
      $region42: #{tpu_custom_call.1} parent=5 // pred_check_branch
        %564 = sbr.rel (%p562) target = $region44
      $region43: #{tpu_custom_call.1} parent=5 // pred_region
        %s565 = ssub.s32 %s13, 2
        // Predicated region
        $region45: #{tpu_custom_call.1} parent=43 // pred_check
          %p566 = pneg %p110
        $region46: #{tpu_custom_call.1} parent=43 // pred_check_branch
          %568 = sbr.rel (%p566) target = $region48
        $region47: #{tpu_custom_call.1} parent=43 // pred_region
          %s569 = sand.u32 %s95, 1
          %s570 = scalar_lea.sflag [#allocation4], %s569
          %s571 = sand.u32 %s95, 1
          %s572 = smul.addr %s571, 8
          %s573 = scalar_lea.vmem [#allocation5], %s572
          %575 = dma.done %s570, 128
        $region48: #{tpu_custom_call.1} parent=43 // pred_fallthru
          _
      $region44: #{tpu_custom_call.1} parent=5 // pred_fallthru
        _
    $region6: #{tpu_custom_call.1} parent=1 // loop_footer
      %s17 = sadd.s32 1, %s13
    $region7: #{tpu_custom_call.1} parent=1 // loop_footer_branch
      %12 = sbr.rel target = $region3
    $region8: #{tpu_custom_call.1} parent=1 // loop_exit
      _
    %576 = vsyncpa [#allocation3], 1
    %s577 = scalar_lea.sflag [#allocation3], 1
    %578 = vsyncpa %s577, 1
    %579 = vsyncpa [#allocation4], 1
    %s580 = scalar_lea.sflag [#allocation4], 1
    %581 = vsyncpa %s580, 1

</llo_original>
